<compile_context>
chip_gen: v5e
topology: v5e:2x2
jax: 0.10.0
libtpu: 0.0.40
codegen_flags: <defaults>
</compile_context>

<pallas_src>
import math

import jax
import jax.numpy as jnp
from jax.experimental import pallas as pl
from jax.experimental.pallas import tpu as pltpu  # noqa: F401  (kept for TPU-specific tuning hooks)


# ----------------------------- configuration --------------------------------
B = 2            # batch
T = 2            # frames per video
C = 3            # channels
FRAME = 16       # frame_size (H == W == FRAME)
PATCH = 8        # patch size
HIDDEN = 32      # transformer hidden dim (latent_dim analogue)
MLP = 64         # MLP hidden dim
PPF = (FRAME // PATCH) ** 2          # patches per frame = 4
S = T * PPF                          # tokens per batch element = 8
PATCH_DIM = C * PATCH * PATCH        # 192
FC_OUT = FRAME * FRAME * C           # 768
LN_EPS = 1e-5
NEG_INF = -1e9

BS = B * S                           # 16 tokens total
BT = B * T                           # 4 pooled frames total

# bf16 MXU operands everywhere (f32 accumulation).  Device-independent.
MM_DTYPE = jnp.bfloat16

# q/k/v packed at 128-lane stride so each slice starts on a vreg boundary.
QKV_STRIDE = 128
QKV_W = 3 * QKV_STRIDE               # 384

# ---- packed "vector" slab layout: (VEC_ROWS, 128) f32 ----
VEC_LANES = 128
ROW_POS = 0                          # rows [0, BS): pos-emb (pre-tiled) + bemb
ROW_MASK = ROW_POS + BS              # rows [BS, 2*BS): block-diag additive mask
ROW_POOL = ROW_MASK + BS             # rows [2*BS, 2*BS+BT): block-diag pool
ROW_LN1G = ROW_POOL + BT
ROW_LN1B = ROW_LN1G + 1
ROW_BQ = ROW_LN1B + 1
ROW_BK = ROW_BQ + 1
ROW_BV = ROW_BK + 1
ROW_BO = ROW_BV + 1
ROW_LN2G = ROW_BO + 1
ROW_LN2B = ROW_LN2G + 1
ROW_B1 = ROW_LN2B + 1                # cols [:MLP]
ROW_B2 = ROW_B1 + 1
ROW_LNFG = ROW_B2 + 1
ROW_LNFB = ROW_LNFG + 1
VEC_ROWS = ROW_LNFB + 1              # 48

# ---- fused Wo / W1 / W2 slab layout: (2*HIDDEN + MLP, 128) ----
OM_ROWS = 2 * HIDDEN + MLP           # 128


# ------------------------------- the kernel ---------------------------------
def _layernorm(x, g, b):
    mu = jnp.mean(x, axis=-1, keepdims=True)
    var = jnp.mean((x - mu) * (x - mu), axis=-1, keepdims=True)
    return (x - mu) * jax.lax.rsqrt(var + LN_EPS) * g + b


def generator_kernel(x_ref, w_in_ref, w_qkv_ref, w_om_ref, w_fc_ref,
                     bfc_ref, vecs_ref, out_ref):
    # x_ref    : (BS, PATCH_DIM)    bf16 patch tokens (whole batch)
    # w_in_ref : (PATCH_DIM, HIDDEN)             bf16 patch embedding
    # w_qkv_ref: (HIDDEN, 3*128)                 bf16, q/k/v at lanes 0/128/256
    # w_om_ref : (128, 128)                      bf16 [Wo; W1; W2] stacked by rows
    # w_fc_ref : (HIDDEN, FC_OUT)                bf16 fc head
    # bfc_ref  : (1, FC_OUT)                     f32 fc bias
    # vecs_ref : (VEC_ROWS, 128)                 f32 pos/mask/pool/LN/biases
    # out_ref  : (BT, FC_OUT)                    f32
    mmdt = w_in_ref.dtype

    # ---- unpack vector slab (static slices, all f32) ----
    pos = vecs_ref[ROW_POS:ROW_POS + BS, :HIDDEN]          # pos + bemb, tiled
    mask = vecs_ref[ROW_MASK:ROW_MASK + BS, :BS]           # block-diag additive
    pool = vecs_ref[ROW_POOL:ROW_POOL + BT, :BS]           # block-diag mean-pool
    ln1g = vecs_ref[ROW_LN1G:ROW_LN1G + 1, :HIDDEN]
    ln1b = vecs_ref[ROW_LN1B:ROW_LN1B + 1, :HIDDEN]
    bq = vecs_ref[ROW_BQ:ROW_BQ + 1, :HIDDEN]
    bk = vecs_ref[ROW_BK:ROW_BK + 1, :HIDDEN]
    bv = vecs_ref[ROW_BV:ROW_BV + 1, :HIDDEN]
    bo = vecs_ref[ROW_BO:ROW_BO + 1, :HIDDEN]
    ln2g = vecs_ref[ROW_LN2G:ROW_LN2G + 1, :HIDDEN]
    ln2b = vecs_ref[ROW_LN2B:ROW_LN2B + 1, :HIDDEN]
    b1 = vecs_ref[ROW_B1:ROW_B1 + 1, :MLP]
    b2 = vecs_ref[ROW_B2:ROW_B2 + 1, :HIDDEN]
    lnfg = vecs_ref[ROW_LNFG:ROW_LNFG + 1, :HIDDEN]
    lnfb = vecs_ref[ROW_LNFB:ROW_LNFB + 1, :HIDDEN]

    # ---- patch embedding + (pre-summed) positional embedding ----
    h = jnp.dot(x_ref[...], w_in_ref[...],
                preferred_element_type=jnp.float32) + pos           # (BS, D)

    # ---- self-attention over the whole batch (block-diagonal masked) ----
    hn = _layernorm(h, ln1g, ln1b)
    qkv = jnp.dot(hn.astype(mmdt), w_qkv_ref[...],
                  preferred_element_type=jnp.float32)               # (BS, 384)
    q = qkv[:, 0:HIDDEN] + bq
    k = qkv[:, QKV_STRIDE:QKV_STRIDE + HIDDEN] + bk
    v = qkv[:, 2 * QKV_STRIDE:2 * QKV_STRIDE + HIDDEN] + bv

    sc = jax.lax.dot_general(q, k, (((1,), (1,)), ((), ())),
                             preferred_element_type=jnp.float32)    # (BS, BS)
    sc = sc * (1.0 / math.sqrt(HIDDEN)) + mask
    sc = sc - jnp.max(sc, axis=-1, keepdims=True)
    p = jnp.exp(sc)
    p = p * pl.reciprocal(jnp.sum(p, axis=-1, keepdims=True), approx=True)
    attn = jnp.dot(p, v, preferred_element_type=jnp.float32)        # (BS, D)

    h = h + jnp.dot(attn.astype(mmdt), w_om_ref[0:HIDDEN, 0:HIDDEN],
                    preferred_element_type=jnp.float32) + bo

    # ---- MLP ----
    hn = _layernorm(h, ln2g, ln2b)
    m = jnp.dot(hn.astype(mmdt), w_om_ref[HIDDEN:2 * HIDDEN, 0:MLP],
                preferred_element_type=jnp.float32) + b1
    # TODO(synk): torch nn.GELU defaults to exact erf; tanh approximation used.
    m = jax.nn.gelu(m, approximate=True)
    h = h + jnp.dot(m.astype(mmdt),
                    w_om_ref[2 * HIDDEN:2 * HIDDEN + MLP, 0:HIDDEN],
                    preferred_element_type=jnp.float32) + b2

    # ---- final LN + per-frame mean pool (block-diag matmul) + fc head ----
    h = _layernorm(h, lnfg, lnfb)                                   # (BS, D)
    pooled = jnp.dot(pool, h, preferred_element_type=jnp.float32)   # (BT, D)
    out = jnp.dot(pooled.astype(mmdt), w_fc_ref[...],
                  preferred_element_type=jnp.float32) + bfc_ref[...]
    out_ref[...] = out.astype(out_ref.dtype)                        # one lane-dense store


# ----------------------- one-time parameter packing -------------------------
def _patchify(z):
    """(B, T, C, H, W) -> (B, S, C*PATCH*PATCH), Conv2d patch-embed order."""
    b, t, c, h, w = z.shape
    nh, nw = h // PATCH, w // PATCH
    x = z.reshape(b, t, c, nh, PATCH, nw, PATCH)
    x = jnp.transpose(x, (0, 1, 3, 5, 2, 4, 6))       # (B, T, nh, nw, C, P, P)
    return x.reshape(b, t * nh * nw, c * PATCH * PATCH)


def pack_params(params):
    """Pack all parameters into 6 ready-to-DMA slabs.  Runs ONCE at init."""
    f32 = jnp.float32

    w_in = params["wemb"].astype(MM_DTYPE)                        # (192, 32)

    w_qkv = jnp.zeros((HIDDEN, QKV_W), f32)                       # (32, 384)
    w_qkv = w_qkv.at[:, 0:HIDDEN].set(params["wq"])
    w_qkv = w_qkv.at[:, QKV_STRIDE:QKV_STRIDE + HIDDEN].set(params["wk"])
    w_qkv = w_qkv.at[:, 2 * QKV_STRIDE:2 * QKV_STRIDE + HIDDEN].set(params["wv"])
    w_qkv = w_qkv.astype(MM_DTYPE)

    w_om = jnp.zeros((OM_ROWS, 128), f32)                         # (128, 128)
    w_om = w_om.at[0:HIDDEN, 0:HIDDEN].set(params["wo"])
    w_om = w_om.at[HIDDEN:2 * HIDDEN, 0:MLP].set(params["w1"])
    w_om = w_om.at[2 * HIDDEN:2 * HIDDEN + MLP, 0:HIDDEN].set(params["w2"])
    w_om = w_om.astype(MM_DTYPE)

    w_fc = params["wfc"].astype(MM_DTYPE)                         # (32, 768)
    bfc = params["bfc"].astype(f32).reshape(1, FC_OUT)            # (1, 768)

    # pos-emb tiled over the batch, with the embedding bias pre-added.
    pos_all = jnp.tile(params["pos"] + params["bemb"], (B, 1))    # (BS, 32)
    # Block-diagonal additive attention mask (0 within batch, -1e9 across).
    blk = jnp.kron(jnp.eye(B, dtype=f32), jnp.ones((S, S), f32))  # (BS, BS)
    mask = (1.0 - blk) * NEG_INF
    # Block-diagonal per-frame mean-pool matrix.
    pool = jnp.kron(jnp.eye(BT, dtype=f32), jnp.ones((1, PPF), f32)) / PPF

    vecs = jnp.zeros((VEC_ROWS, VEC_LANES), f32)

    def put(v, row, val):
        val = jnp.asarray(val, f32)
        if val.ndim == 1:
            val = val[None, :]
        return v.at[row:row + val.shape[0], :val.shape[1]].set(val)

    vecs = put(vecs, ROW_POS, pos_all)
    vecs = put(vecs, ROW_MASK, mask)
    vecs = put(vecs, ROW_POOL, pool)
    vecs = put(vecs, ROW_LN1G, params["ln1g"])
    vecs = put(vecs, ROW_LN1B, params["ln1b"])
    vecs = put(vecs, ROW_BQ, params["bq"])
    vecs = put(vecs, ROW_BK, params["bk"])
    vecs = put(vecs, ROW_BV, params["bv"])
    vecs = put(vecs, ROW_BO, params["bo"])
    vecs = put(vecs, ROW_LN2G, params["ln2g"])
    vecs = put(vecs, ROW_LN2B, params["ln2b"])
    vecs = put(vecs, ROW_B1, params["b1"])
    vecs = put(vecs, ROW_B2, params["b2"])
    vecs = put(vecs, ROW_LNFG, params["lnfg"])
    vecs = put(vecs, ROW_LNFB, params["lnfb"])
    return (w_in, w_qkv, w_om, w_fc, bfc, vecs)


# ------------------------------ JAX wrapper ----------------------------------
_FLOPS = 2 * (BS * PATCH_DIM * HIDDEN         # patch embed
              + BS * HIDDEN * 3 * HIDDEN      # fused qkv
              + 2 * BS * BS * HIDDEN          # scores + p@v
              + BS * HIDDEN * HIDDEN          # output proj
              + 2 * BS * HIDDEN * MLP         # mlp
              + BT * BS * HIDDEN              # pooling matmul
              + BT * HIDDEN * FC_OUT)         # fc head
_TRANS = BS * BS + BS * MLP
_BYTES = (BS * PATCH_DIM * 2
          + PATCH_DIM * HIDDEN * 2 + HIDDEN * QKV_W * 2 + OM_ROWS * 128 * 2
          + HIDDEN * FC_OUT * 2 + FC_OUT * 4 + VEC_ROWS * VEC_LANES * 4
          + BT * FC_OUT * 4)


@jax.jit
def video_gan_forward(z, packed):
    # z: (B, T, C, H, W) float32; packed: output of pack_params (built once).
    tokens = _patchify(z).reshape(BS, PATCH_DIM).astype(MM_DTYPE)

    out = pl.pallas_call(
        generator_kernel,
        out_shape=jax.ShapeDtypeStruct((BT, FC_OUT), jnp.float32),
        cost_estimate=pl.CostEstimate(
            flops=_FLOPS, transcendentals=_TRANS, bytes_accessed=_BYTES),
    )(tokens, *packed)

    # reshape fc output into a video: (B, T, 3, FRAME, FRAME)
    return out.reshape(B, T, C, FRAME, FRAME)


# --------------------------- pure-JAX reference ------------------------------
def _reference_forward(z, params):
    """Same math in plain JAX (weights/activations quantized like the kernel)."""
    f32 = jnp.float32

    def qd(x):   # mirror the kernel's bf16 matmul-operand rounding
        return x.astype(MM_DTYPE).astype(f32)

    def ln(x, g, b):
        mu = jnp.mean(x, -1, keepdims=True)
        var = jnp.mean((x - mu) ** 2, -1, keepdims=True)
        return (x - mu) * jax.lax.rsqrt(var + LN_EPS) * g + b

    tokens = qd(_patchify(z))                                     # (B, S, Pd)
    h = jnp.einsum("bsp,pd->bsd", tokens, qd(params["wemb"]))
    h = h + params["bemb"] + params["pos"]

    hn = ln(h, params["ln1g"], params["ln1b"])
    q = jnp.einsum("bsd,de->bse", qd(hn), qd(params["wq"])) + params["bq"]
    k = jnp.einsum("bsd,de->bse", qd(hn), qd(params["wk"])) + params["bk"]
    v = jnp.einsum("bsd,de->bse", qd(hn), qd(params["wv"])) + params["bv"]
    sc = jnp.einsum("bqd,bkd->bqk", q, k) / math.sqrt(HIDDEN)
    p = jax.nn.softmax(sc, axis=-1)
    attn = jnp.einsum("bqk,bkd->bqd", p, v)
    h = h + jnp.einsum("bsd,de->bse", qd(attn), qd(params["wo"])) + params["bo"]

    hn = ln(h, params["ln2g"], params["ln2b"])
    m = jnp.einsum("bsd,dm->bsm", qd(hn), qd(params["w1"])) + params["b1"]
    m = jax.nn.gelu(m, approximate=True)
    h = h + jnp.einsum("bsm,md->bsd", qd(m), qd(params["w2"])) + params["b2"]

    h = ln(h, params["lnfg"], params["lnfb"])
    pooled = h.reshape(B, T, PPF, HIDDEN).mean(axis=2)
    out = jnp.einsum("btd,df->btf", qd(pooled), qd(params["wfc"])) + params["bfc"]
    return out.reshape(B, T, C, FRAME, FRAME)


# --------------------------- deterministic params ----------------------------
def init_params(key):
    ks = jax.random.split(key, 16)

    def lin(k, fan_in, shape):
        return jax.random.normal(k, shape, jnp.float32) / math.sqrt(fan_in)

    return {
        "wemb": lin(ks[0], PATCH_DIM, (PATCH_DIM, HIDDEN)),
        "bemb": jnp.zeros((1, HIDDEN), jnp.float32),
        "pos": 0.02 * jax.random.normal(ks[1], (S, HIDDEN), jnp.float32),
        "ln1g": jnp.ones((1, HIDDEN), jnp.float32),
        "ln1b": jnp.zeros((1, HIDDEN), jnp.float32),
        "wq": lin(ks[2], HIDDEN, (HIDDEN, HIDDEN)),
        "bq": jnp.zeros((1, HIDDEN), jnp.float32),
        "wk": lin(ks[3], HIDDEN, (HIDDEN, HIDDEN)),
        "bk": jnp.zeros((1, HIDDEN), jnp.float32),
        "wv": lin(ks[4], HIDDEN, (HIDDEN, HIDDEN)),
        "bv": jnp.zeros((1, HIDDEN), jnp.float32),
        "wo": lin(ks[5], HIDDEN, (HIDDEN, HIDDEN)),
        "bo": jnp.zeros((1, HIDDEN), jnp.float32),
        "ln2g": jnp.ones((1, HIDDEN), jnp.float32),
        "ln2b": jnp.zeros((1, HIDDEN), jnp.float32),
        "w1": lin(ks[6], HIDDEN, (HIDDEN, MLP)),
        "b1": jnp.zeros((1, MLP), jnp.float32),
        "w2": lin(ks[7], MLP, (MLP, HIDDEN)),
        "b2": jnp.zeros((1, HIDDEN), jnp.float32),
        "lnfg": jnp.ones((1, HIDDEN), jnp.float32),
        "lnfb": jnp.zeros((1, HIDDEN), jnp.float32),
        "wfc": lin(ks[8], HIDDEN, (HIDDEN, FC_OUT)),
        "bfc": jnp.zeros((1, FC_OUT), jnp.float32),
    }


if __name__ == "__main__":
    key = jax.random.PRNGKey(0)
    z = jax.random.normal(key, (B, T, C, FRAME, FRAME), jnp.float32)
    params = init_params(jax.random.PRNGKey(42))

    # Parameter packing runs once at init (hoisted off the per-call hot path).
    packed = pack_params(params)
    packed = tuple(jax.block_until_ready(a) for a in packed)

    video = video_gan_forward(z, packed)
    jax.block_until_ready(video)

    assert video.shape == (B, T, C, FRAME, FRAME), video.shape
    assert jnp.all(jnp.isfinite(video)), "non-finite output"

    # Sanity check against a pure-JAX reference (loose tol covers the approx
    # reciprocal in the softmax and bf16 accumulation-order differences).
    ref = _reference_forward(z, params)
    max_err = float(jnp.max(jnp.abs(video - ref)))
    assert max_err < 0.1, f"kernel vs reference max abs diff = {max_err}"

    print("KERNEL_OK")
</pallas_src>

<mosaic_0001>
module attributes {stable_mosaic.version = 11 : i64} {
  func.func @generator_kernel(%arg0: memref<16x192xbf16, #tpu.memory_space<vmem>>, %arg1: memref<192x32xbf16, #tpu.memory_space<vmem>>, %arg2: memref<32x384xbf16, #tpu.memory_space<vmem>>, %arg3: memref<128x128xbf16, #tpu.memory_space<vmem>>, %arg4: memref<32x768xbf16, #tpu.memory_space<vmem>>, %arg5: memref<1x768xf32, #tpu.memory_space<vmem>>, %arg6: memref<48x128xf32, #tpu.memory_space<vmem>>, %arg7: memref<4x768xf32, #tpu.memory_space<vmem>>) attributes {dimension_semantics = [], scalar_prefetch = 0 : i64, scratch_operands = 0 : i64, tpu.core_type = #tpu.core_type<tc>} {
    %c0 = arith.constant 0 : index
    %c0_0 = arith.constant 0 : index
    %0 = vector.load %arg6[%c0, %c0_0] : memref<48x128xf32, #tpu.memory_space<vmem>>, vector<16x32xf32>
    %c16 = arith.constant 16 : index
    %c0_1 = arith.constant 0 : index
    %1 = vector.load %arg6[%c16, %c0_1] : memref<48x128xf32, #tpu.memory_space<vmem>>, vector<16x16xf32>
    %c32 = arith.constant 32 : index
    %c0_2 = arith.constant 0 : index
    %2 = vector.load %arg6[%c32, %c0_2] : memref<48x128xf32, #tpu.memory_space<vmem>>, vector<4x16xf32>
    %c36 = arith.constant 36 : index
    %c0_3 = arith.constant 0 : index
    %3 = vector.load %arg6[%c36, %c0_3] : memref<48x128xf32, #tpu.memory_space<vmem>>, vector<1x32xf32>
    %c37 = arith.constant 37 : index
    %c0_4 = arith.constant 0 : index
    %4 = vector.load %arg6[%c37, %c0_4] : memref<48x128xf32, #tpu.memory_space<vmem>>, vector<1x32xf32>
    %c38 = arith.constant 38 : index
    %c0_5 = arith.constant 0 : index
    %5 = vector.load %arg6[%c38, %c0_5] : memref<48x128xf32, #tpu.memory_space<vmem>>, vector<1x32xf32>
    %c39 = arith.constant 39 : index
    %c0_6 = arith.constant 0 : index
    %6 = vector.load %arg6[%c39, %c0_6] : memref<48x128xf32, #tpu.memory_space<vmem>>, vector<1x32xf32>
    %c40 = arith.constant 40 : index
    %c0_7 = arith.constant 0 : index
    %7 = vector.load %arg6[%c40, %c0_7] : memref<48x128xf32, #tpu.memory_space<vmem>>, vector<1x32xf32>
    %c41 = arith.constant 41 : index
    %c0_8 = arith.constant 0 : index
    %8 = vector.load %arg6[%c41, %c0_8] : memref<48x128xf32, #tpu.memory_space<vmem>>, vector<1x32xf32>
    %c42 = arith.constant 42 : index
    %c0_9 = arith.constant 0 : index
    %9 = vector.load %arg6[%c42, %c0_9] : memref<48x128xf32, #tpu.memory_space<vmem>>, vector<1x32xf32>
    %c43 = arith.constant 43 : index
    %c0_10 = arith.constant 0 : index
    %10 = vector.load %arg6[%c43, %c0_10] : memref<48x128xf32, #tpu.memory_space<vmem>>, vector<1x32xf32>
    %c44 = arith.constant 44 : index
    %c0_11 = arith.constant 0 : index
    %11 = vector.load %arg6[%c44, %c0_11] : memref<48x128xf32, #tpu.memory_space<vmem>>, vector<1x64xf32>
    %c45 = arith.constant 45 : index
    %c0_12 = arith.constant 0 : index
    %12 = vector.load %arg6[%c45, %c0_12] : memref<48x128xf32, #tpu.memory_space<vmem>>, vector<1x32xf32>
    %c46 = arith.constant 46 : index
    %c0_13 = arith.constant 0 : index
    %13 = vector.load %arg6[%c46, %c0_13] : memref<48x128xf32, #tpu.memory_space<vmem>>, vector<1x32xf32>
    %c47 = arith.constant 47 : index
    %c0_14 = arith.constant 0 : index
    %14 = vector.load %arg6[%c47, %c0_14] : memref<48x128xf32, #tpu.memory_space<vmem>>, vector<1x32xf32>
    %c0_15 = arith.constant 0 : index
    %c0_16 = arith.constant 0 : index
    %15 = vector.load %arg0[%c0_15, %c0_16] : memref<16x192xbf16, #tpu.memory_space<vmem>>, vector<16x192xbf16>
    %c0_17 = arith.constant 0 : index
    %c0_18 = arith.constant 0 : index
    %16 = vector.load %arg1[%c0_17, %c0_18] : memref<192x32xbf16, #tpu.memory_space<vmem>>, vector<192x32xbf16>
    %cst = arith.constant dense<0.000000e+00> : vector<16x32xf32>
    %17 = tpu.matmul %15, %16, %cst {dimension_numbers = #tpu.dot_dimension_numbers<[1], [0], [0], [1], [0, 0, 1, 1], [], []>} : vector<16x192xbf16>, vector<192x32xbf16>, vector<16x32xf32> -> vector<16x32xf32>
    %18 = arith.addf %17, %0 : vector<16x32xf32>
    %cst_19 = arith.constant dense<0.000000e+00> : vector<16xf32>
    %19 = vector.multi_reduction <add>, %18, %cst_19 [1] : vector<16x32xf32> to vector<16xf32>
    %20 = vector.shape_cast %19 : vector<16xf32> to vector<16x1xf32>
    %cst_20 = arith.constant 3.200000e+01 : f32
    %21 = vector.broadcast %cst_20 : f32 to vector<16x1xf32>
    %22 = arith.divf %20, %21 : vector<16x1xf32>
    %23 = vector.broadcast %22 : vector<16x1xf32> to vector<16x32xf32>
    %24 = arith.subf %18, %23 : vector<16x32xf32>
    %25 = vector.broadcast %22 : vector<16x1xf32> to vector<16x32xf32>
    %26 = arith.subf %18, %25 : vector<16x32xf32>
    %27 = arith.mulf %24, %26 : vector<16x32xf32>
    %cst_21 = arith.constant dense<0.000000e+00> : vector<16xf32>
    %28 = vector.multi_reduction <add>, %27, %cst_21 [1] : vector<16x32xf32> to vector<16xf32>
    %29 = vector.shape_cast %28 : vector<16xf32> to vector<16x1xf32>
    %cst_22 = arith.constant 3.200000e+01 : f32
    %30 = vector.broadcast %cst_22 : f32 to vector<16x1xf32>
    %31 = arith.divf %29, %30 : vector<16x1xf32>
    %32 = vector.broadcast %22 : vector<16x1xf32> to vector<16x32xf32>
    %33 = arith.subf %18, %32 : vector<16x32xf32>
    %cst_23 = arith.constant 9.99999974E-6 : f32
    %34 = vector.broadcast %cst_23 : f32 to vector<16x1xf32>
    %35 = arith.addf %31, %34 : vector<16x1xf32>
    %36 = math.rsqrt %35 : vector<16x1xf32>
    %37 = vector.broadcast %36 : vector<16x1xf32> to vector<16x32xf32>
    %38 = arith.mulf %33, %37 : vector<16x32xf32>
    %39 = vector.broadcast %3 : vector<1x32xf32> to vector<16x32xf32>
    %40 = arith.mulf %38, %39 : vector<16x32xf32>
    %41 = vector.broadcast %4 : vector<1x32xf32> to vector<16x32xf32>
    %42 = arith.addf %40, %41 : vector<16x32xf32>
    %43 = arith.truncf %42 : vector<16x32xf32> to vector<16x32xbf16>
    %c0_24 = arith.constant 0 : index
    %c0_25 = arith.constant 0 : index
    %44 = vector.load %arg2[%c0_24, %c0_25] : memref<32x384xbf16, #tpu.memory_space<vmem>>, vector<32x384xbf16>
    %cst_26 = arith.constant dense<0.000000e+00> : vector<16x384xf32>
    %45 = tpu.matmul %43, %44, %cst_26 {dimension_numbers = #tpu.dot_dimension_numbers<[1], [0], [0], [1], [0, 0, 1, 1], [], []>} : vector<16x32xbf16>, vector<32x384xbf16>, vector<16x384xf32> -> vector<16x384xf32>
    %46 = vector.extract_strided_slice %45 {offsets = [0, 0], sizes = [16, 32], strides = [1, 1]} : vector<16x384xf32> to vector<16x32xf32>
    %47 = vector.broadcast %5 : vector<1x32xf32> to vector<16x32xf32>
    %48 = arith.addf %46, %47 : vector<16x32xf32>
    %49 = vector.extract_strided_slice %45 {offsets = [0, 128], sizes = [16, 32], strides = [1, 1]} : vector<16x384xf32> to vector<16x32xf32>
    %50 = vector.broadcast %6 : vector<1x32xf32> to vector<16x32xf32>
    %51 = arith.addf %49, %50 : vector<16x32xf32>
    %52 = vector.extract_strided_slice %45 {offsets = [0, 256], sizes = [16, 32], strides = [1, 1]} : vector<16x384xf32> to vector<16x32xf32>
    %53 = vector.broadcast %7 : vector<1x32xf32> to vector<16x32xf32>
    %54 = arith.addf %52, %53 : vector<16x32xf32>
    %cst_27 = arith.constant dense<0.000000e+00> : vector<16x16xf32>
    %55 = tpu.matmul %48, %51, %cst_27 {dimension_numbers = #tpu.dot_dimension_numbers<[1], [1], [0], [0], [0, 0, 1, 0], [], []>} : vector<16x32xf32>, vector<16x32xf32>, vector<16x16xf32> -> vector<16x16xf32>
    %cst_28 = arith.constant 0.176776692 : f32
    %56 = vector.broadcast %cst_28 : f32 to vector<16x16xf32>
    %57 = arith.mulf %55, %56 : vector<16x16xf32>
    %58 = arith.addf %57, %1 : vector<16x16xf32>
    %cst_29 = arith.constant dense<0xFF800000> : vector<16xf32>
    %59 = vector.multi_reduction <maximumf>, %58, %cst_29 [1] : vector<16x16xf32> to vector<16xf32>
    %60 = vector.shape_cast %59 : vector<16xf32> to vector<16x1xf32>
    %61 = vector.broadcast %60 : vector<16x1xf32> to vector<16x16xf32>
    %62 = arith.subf %58, %61 : vector<16x16xf32>
    %63 = math.exp %62 : vector<16x16xf32>
    %cst_30 = arith.constant dense<0.000000e+00> : vector<16xf32>
    %64 = vector.multi_reduction <add>, %63, %cst_30 [1] : vector<16x16xf32> to vector<16xf32>
    %65 = vector.shape_cast %64 : vector<16xf32> to vector<16x1xf32>
    %66 = tpu.reciprocal %65 {approx = true} : vector<16x1xf32> -> vector<16x1xf32>
    %67 = vector.broadcast %66 : vector<16x1xf32> to vector<16x16xf32>
    %68 = arith.mulf %63, %67 : vector<16x16xf32>
    %cst_31 = arith.constant dense<0.000000e+00> : vector<16x32xf32>
    %69 = tpu.matmul %68, %54, %cst_31 {dimension_numbers = #tpu.dot_dimension_numbers<[1], [0], [0], [1], [0, 0, 1, 1], [], []>} : vector<16x16xf32>, vector<16x32xf32>, vector<16x32xf32> -> vector<16x32xf32>
    %70 = arith.truncf %69 : vector<16x32xf32> to vector<16x32xbf16>
    %c0_32 = arith.constant 0 : index
    %c0_33 = arith.constant 0 : index
    %71 = vector.load %arg3[%c0_32, %c0_33] : memref<128x128xbf16, #tpu.memory_space<vmem>>, vector<32x32xbf16>
    %cst_34 = arith.constant dense<0.000000e+00> : vector<16x32xf32>
    %72 = tpu.matmul %70, %71, %cst_34 {dimension_numbers = #tpu.dot_dimension_numbers<[1], [0], [0], [1], [0, 0, 1, 1], [], []>} : vector<16x32xbf16>, vector<32x32xbf16>, vector<16x32xf32> -> vector<16x32xf32>
    %73 = arith.addf %18, %72 : vector<16x32xf32>
    %74 = vector.broadcast %8 : vector<1x32xf32> to vector<16x32xf32>
    %75 = arith.addf %73, %74 : vector<16x32xf32>
    %cst_35 = arith.constant dense<0.000000e+00> : vector<16xf32>
    %76 = vector.multi_reduction <add>, %75, %cst_35 [1] : vector<16x32xf32> to vector<16xf32>
    %77 = vector.shape_cast %76 : vector<16xf32> to vector<16x1xf32>
    %cst_36 = arith.constant 3.200000e+01 : f32
    %78 = vector.broadcast %cst_36 : f32 to vector<16x1xf32>
    %79 = arith.divf %77, %78 : vector<16x1xf32>
    %80 = vector.broadcast %79 : vector<16x1xf32> to vector<16x32xf32>
    %81 = arith.subf %75, %80 : vector<16x32xf32>
    %82 = vector.broadcast %79 : vector<16x1xf32> to vector<16x32xf32>
    %83 = arith.subf %75, %82 : vector<16x32xf32>
    %84 = arith.mulf %81, %83 : vector<16x32xf32>
    %cst_37 = arith.constant dense<0.000000e+00> : vector<16xf32>
    %85 = vector.multi_reduction <add>, %84, %cst_37 [1] : vector<16x32xf32> to vector<16xf32>
    %86 = vector.shape_cast %85 : vector<16xf32> to vector<16x1xf32>
    %cst_38 = arith.constant 3.200000e+01 : f32
    %87 = vector.broadcast %cst_38 : f32 to vector<16x1xf32>
    %88 = arith.divf %86, %87 : vector<16x1xf32>
    %89 = vector.broadcast %79 : vector<16x1xf32> to vector<16x32xf32>
    %90 = arith.subf %75, %89 : vector<16x32xf32>
    %cst_39 = arith.constant 9.99999974E-6 : f32
    %91 = vector.broadcast %cst_39 : f32 to vector<16x1xf32>
    %92 = arith.addf %88, %91 : vector<16x1xf32>
    %93 = math.rsqrt %92 : vector<16x1xf32>
    %94 = vector.broadcast %93 : vector<16x1xf32> to vector<16x32xf32>
    %95 = arith.mulf %90, %94 : vector<16x32xf32>
    %96 = vector.broadcast %9 : vector<1x32xf32> to vector<16x32xf32>
    %97 = arith.mulf %95, %96 : vector<16x32xf32>
    %98 = vector.broadcast %10 : vector<1x32xf32> to vector<16x32xf32>
    %99 = arith.addf %97, %98 : vector<16x32xf32>
    %100 = arith.truncf %99 : vector<16x32xf32> to vector<16x32xbf16>
    %c32_40 = arith.constant 32 : index
    %c0_41 = arith.constant 0 : index
    %101 = vector.load %arg3[%c32_40, %c0_41] : memref<128x128xbf16, #tpu.memory_space<vmem>>, vector<32x64xbf16>
    %cst_42 = arith.constant dense<0.000000e+00> : vector<16x64xf32>
    %102 = tpu.matmul %100, %101, %cst_42 {dimension_numbers = #tpu.dot_dimension_numbers<[1], [0], [0], [1], [0, 0, 1, 1], [], []>} : vector<16x32xbf16>, vector<32x64xbf16>, vector<16x64xf32> -> vector<16x64xf32>
    %103 = vector.broadcast %11 : vector<1x64xf32> to vector<16x64xf32>
    %104 = arith.addf %102, %103 : vector<16x64xf32>
    %105 = arith.mulf %104, %104 : vector<16x64xf32>
    %106 = arith.mulf %104, %105 : vector<16x64xf32>
    %cst_43 = arith.constant 4.471500e-02 : f32
    %107 = vector.broadcast %cst_43 : f32 to vector<16x64xf32>
    %108 = arith.mulf %107, %106 : vector<16x64xf32>
    %109 = arith.addf %104, %108 : vector<16x64xf32>
    %cst_44 = arith.constant 0.797884583 : f32
    %110 = vector.broadcast %cst_44 : f32 to vector<16x64xf32>
    %111 = arith.mulf %110, %109 : vector<16x64xf32>
    %112 = math.tanh %111 : vector<16x64xf32>
    %cst_45 = arith.constant 1.000000e+00 : f32
    %113 = vector.broadcast %cst_45 : f32 to vector<16x64xf32>
    %114 = arith.addf %113, %112 : vector<16x64xf32>
    %cst_46 = arith.constant 5.000000e-01 : f32
    %115 = vector.broadcast %cst_46 : f32 to vector<16x64xf32>
    %116 = arith.mulf %115, %114 : vector<16x64xf32>
    %117 = arith.mulf %104, %116 : vector<16x64xf32>
    %118 = arith.truncf %117 : vector<16x64xf32> to vector<16x64xbf16>
    %c64 = arith.constant 64 : index
    %c0_47 = arith.constant 0 : index
    %119 = vector.load %arg3[%c64, %c0_47] : memref<128x128xbf16, #tpu.memory_space<vmem>>, vector<64x32xbf16>
    %cst_48 = arith.constant dense<0.000000e+00> : vector<16x32xf32>
    %120 = tpu.matmul %118, %119, %cst_48 {dimension_numbers = #tpu.dot_dimension_numbers<[1], [0], [0], [1], [0, 0, 1, 1], [], []>} : vector<16x64xbf16>, vector<64x32xbf16>, vector<16x32xf32> -> vector<16x32xf32>
    %121 = arith.addf %75, %120 : vector<16x32xf32>
    %122 = vector.broadcast %12 : vector<1x32xf32> to vector<16x32xf32>
    %123 = arith.addf %121, %122 : vector<16x32xf32>
    %cst_49 = arith.constant dense<0.000000e+00> : vector<16xf32>
    %124 = vector.multi_reduction <add>, %123, %cst_49 [1] : vector<16x32xf32> to vector<16xf32>
    %125 = vector.shape_cast %124 : vector<16xf32> to vector<16x1xf32>
    %cst_50 = arith.constant 3.200000e+01 : f32
    %126 = vector.broadcast %cst_50 : f32 to vector<16x1xf32>
    %127 = arith.divf %125, %126 : vector<16x1xf32>
    %128 = vector.broadcast %127 : vector<16x1xf32> to vector<16x32xf32>
    %129 = arith.subf %123, %128 : vector<16x32xf32>
    %130 = vector.broadcast %127 : vector<16x1xf32> to vector<16x32xf32>
    %131 = arith.subf %123, %130 : vector<16x32xf32>
    %132 = arith.mulf %129, %131 : vector<16x32xf32>
    %cst_51 = arith.constant dense<0.000000e+00> : vector<16xf32>
    %133 = vector.multi_reduction <add>, %132, %cst_51 [1] : vector<16x32xf32> to vector<16xf32>
    %134 = vector.shape_cast %133 : vector<16xf32> to vector<16x1xf32>
    %cst_52 = arith.constant 3.200000e+01 : f32
    %135 = vector.broadcast %cst_52 : f32 to vector<16x1xf32>
    %136 = arith.divf %134, %135 : vector<16x1xf32>
    %137 = vector.broadcast %127 : vector<16x1xf32> to vector<16x32xf32>
    %138 = arith.subf %123, %137 : vector<16x32xf32>
    %cst_53 = arith.constant 9.99999974E-6 : f32
    %139 = vector.broadcast %cst_53 : f32 to vector<16x1xf32>
    %140 = arith.addf %136, %139 : vector<16x1xf32>
    %141 = math.rsqrt %140 : vector<16x1xf32>
    %142 = vector.broadcast %141 : vector<16x1xf32> to vector<16x32xf32>
    %143 = arith.mulf %138, %142 : vector<16x32xf32>
    %144 = vector.broadcast %13 : vector<1x32xf32> to vector<16x32xf32>
    %145 = arith.mulf %143, %144 : vector<16x32xf32>
    %146 = vector.broadcast %14 : vector<1x32xf32> to vector<16x32xf32>
    %147 = arith.addf %145, %146 : vector<16x32xf32>
    %cst_54 = arith.constant dense<0.000000e+00> : vector<4x32xf32>
    %148 = tpu.matmul %2, %147, %cst_54 {dimension_numbers = #tpu.dot_dimension_numbers<[1], [0], [0], [1], [0, 0, 1, 1], [], []>} : vector<4x16xf32>, vector<16x32xf32>, vector<4x32xf32> -> vector<4x32xf32>
    %149 = arith.truncf %148 : vector<4x32xf32> to vector<4x32xbf16>
    %c0_55 = arith.constant 0 : index
    %c0_56 = arith.constant 0 : index
    %150 = vector.load %arg4[%c0_55, %c0_56] : memref<32x768xbf16, #tpu.memory_space<vmem>>, vector<32x768xbf16>
    %cst_57 = arith.constant dense<0.000000e+00> : vector<4x768xf32>
    %151 = tpu.matmul %149, %150, %cst_57 {dimension_numbers = #tpu.dot_dimension_numbers<[1], [0], [0], [1], [0, 0, 1, 1], [], []>} : vector<4x32xbf16>, vector<32x768xbf16>, vector<4x768xf32> -> vector<4x768xf32>
    %c0_58 = arith.constant 0 : index
    %c0_59 = arith.constant 0 : index
    %152 = vector.load %arg5[%c0_58, %c0_59] : memref<1x768xf32, #tpu.memory_space<vmem>>, vector<1x768xf32>
    %153 = vector.broadcast %152 : vector<1x768xf32> to vector<4x768xf32>
    %154 = arith.addf %151, %153 : vector<4x768xf32>
    %c0_60 = arith.constant 0 : index
    %c0_61 = arith.constant 0 : index
    %155 = vector.load %arg7[%c0_60, %c0_61] : memref<4x768xf32, #tpu.memory_space<vmem>>, vector<4x768xf32>
    tpu.vector_store %arg7[%c0_60, %c0_61], %154 {strides = array<i32>} : memref<4x768xf32, #tpu.memory_space<vmem>>, vector<4x768xf32>,
    return
  }
}

</mosaic_0001>

<llo_original>
// kernel: video_gan_forward.1
$region0: #{video_gan_forward.1}
  #allocation0 [shape = 'u32[]', space=smem, size = 0x4, offset = 0x4, fixed_abs, tag = 'smem constant byte address 0x4 - core index']
  #allocation1 [shape = 'u32[72,128]{1,0:T(1,128)}', space=vmem, size = 0x9000, scoped, tag = 'internal scratch']
  %s0 = inlined_call_operand.vmem [shape: bf16[16,192], index: 0, kind: input, shape index: {}]
  %s1 = inlined_call_operand.vmem [shape: bf16[192,32], index: 1, kind: input, shape index: {}]
  %s2 = inlined_call_operand.vmem [shape: bf16[32,384], index: 2, kind: input, shape index: {}]
  %s3 = inlined_call_operand.vmem [shape: bf16[128,128], index: 3, kind: input, shape index: {}]
  %s4 = inlined_call_operand.vmem [shape: bf16[32,768], index: 4, kind: input, shape index: {}]
  %s5 = inlined_call_operand.vmem [shape: f32[1,768], index: 5, kind: input, shape index: {}]
  %s6 = inlined_call_operand.vmem [shape: f32[48,128], index: 6, kind: input, shape index: {}]
  %s7 = inlined_call_operand.vmem [shape: f32[4,768], index: 7, kind: output, shape index: {}]
  %s8 = sld [smem:[#allocation0]]
  $region38: #{video_gan_forward.1} parent=0
    _
  %s10 = ssub.s32 1, %s8
  %s11 = scalar_select 0, %s10, %s8
  // Predicated region
  $region2: #{video_gan_forward.1} parent=0 // pred_check
    _
  $region3: #{video_gan_forward.1} parent=0 // pred_check_branch
    %13 = sbr.rel (0) target = $region5
  $region4: #{video_gan_forward.1} parent=0 // pred_region
    _
  $region5: #{video_gan_forward.1} parent=0 // pred_fallthru
    _
  // Predicated region
  $region6: #{video_gan_forward.1} parent=0 // pred_check
    _
  $region7: #{video_gan_forward.1} parent=0 // pred_check_branch
    %15 = sbr.rel (0) target = $region9
  $region8: #{video_gan_forward.1} parent=0 // pred_region
    _
  $region9: #{video_gan_forward.1} parent=0 // pred_fallthru
    _
  // Predicated region
  $region10: #{video_gan_forward.1} parent=0 // pred_check
    _
  $region11: #{video_gan_forward.1} parent=0 // pred_check_branch
    %17 = sbr.rel (0) target = $region13
  $region12: #{video_gan_forward.1} parent=0 // pred_region
    _
  $region13: #{video_gan_forward.1} parent=0 // pred_fallthru
    _
  // Predicated region
  $region14: #{video_gan_forward.1} parent=0 // pred_check
    _
  $region15: #{video_gan_forward.1} parent=0 // pred_check_branch
    %19 = sbr.rel (0) target = $region17
  $region16: #{video_gan_forward.1} parent=0 // pred_region
    _
  $region17: #{video_gan_forward.1} parent=0 // pred_fallthru
    _
  // Predicated region
  $region18: #{video_gan_forward.1} parent=0 // pred_check
    _
  $region19: #{video_gan_forward.1} parent=0 // pred_check_branch
    %21 = sbr.rel (0) target = $region21
  $region20: #{video_gan_forward.1} parent=0 // pred_region
    _
  $region21: #{video_gan_forward.1} parent=0 // pred_fallthru
    _
  // Predicated region
  $region22: #{video_gan_forward.1} parent=0 // pred_check
    _
  $region23: #{video_gan_forward.1} parent=0 // pred_check_branch
    %23 = sbr.rel (0) target = $region25
  $region24: #{video_gan_forward.1} parent=0 // pred_region
    _
  $region25: #{video_gan_forward.1} parent=0 // pred_fallthru
    _
  // Predicated region
  $region26: #{video_gan_forward.1} parent=0 // pred_check
    _
  $region27: #{video_gan_forward.1} parent=0 // pred_check_branch
    %25 = sbr.rel (0) target = $region29
  $region28: #{video_gan_forward.1} parent=0 // pred_region
    _
  $region29: #{video_gan_forward.1} parent=0 // pred_fallthru
    _
  %v27 = vld [vmem:[%s6] sm:$0xff]
  %v28 = vld [vmem:[%s6 + $0x8] sm:$0xff]
  %v29 = vld [vmem:[%s6 + $0x10] sm:$0xff]
  %v30 = vld [vmem:[%s6 + $0x18] sm:$0xff]
  %v31 = vld [vmem:[%s6 + $0x20] sm:$0xf]
  %v32 = vld [vmem:[%s6 + $0x24] sm:$0x1]
  %v33 = vld [vmem:[%s6 + $0x25] sm:$0x1]
  %v34 = vld [vmem:[%s6 + $0x26] sm:$0x1]
  %v35 = vld [vmem:[%s6 + $0x27] sm:$0x1]
  %v36 = vld [vmem:[%s6 + $0x28] sm:$0x1]
  %v37 = vld [vmem:[%s6 + $0x29] sm:$0x1]
  %v38 = vld [vmem:[%s6 + $0x2a] sm:$0x1]
  %v39 = vld [vmem:[%s6 + $0x2b] sm:$0x1]
  %v40 = vld [vmem:[%s6 + $0x2c] sm:$0x1]
  %v41 = vld [vmem:[%s6 + $0x2d] sm:$0x1]
  %v42 = vld [vmem:[%s6 + $0x2e] sm:$0x1]
  %v43 = vld [vmem:[%s6 + $0x2f] sm:$0x1]
  %v44 = vld [vmem:[%s0] sm:$0xff]
  %v45 = vld [vmem:[%s0 + $0x8] sm:$0xff]
  %v46 = vld [vmem:[%s1] sm:$0xf]
  %v47 = vld [vmem:[%s1 + $0x4] sm:$0xf]
  %v48 = vld [vmem:[%s1 + $0x8] sm:$0xf]
  %v49 = vld [vmem:[%s1 + $0xc] sm:$0xf]
  %v50 = vld [vmem:[%s1 + $0x10] sm:$0xf]
  %v51 = vld [vmem:[%s1 + $0x14] sm:$0xf]
  %v52 = vld [vmem:[%s1 + $0x18] sm:$0xf]
  %v53 = vld [vmem:[%s1 + $0x1c] sm:$0xf]
  %v54 = vld [vmem:[%s1 + $0x20] sm:$0xf]
  %v55 = vld [vmem:[%s1 + $0x24] sm:$0xf]
  %v56 = vld [vmem:[%s1 + $0x28] sm:$0xf]
  %v57 = vld [vmem:[%s1 + $0x2c] sm:$0xf]
  %v58 = vld [vmem:[%s1 + $0x30] sm:$0xf]
  %v59 = vld [vmem:[%s1 + $0x34] sm:$0xf]
  %v60 = vld [vmem:[%s1 + $0x38] sm:$0xf]
  %v61 = vld [vmem:[%s1 + $0x3c] sm:$0xf]
  %v62 = vld [vmem:[%s1 + $0x40] sm:$0xf]
  %v63 = vld [vmem:[%s1 + $0x44] sm:$0xf]
  %v64 = vld [vmem:[%s1 + $0x48] sm:$0xf]
  %v65 = vld [vmem:[%s1 + $0x4c] sm:$0xf]
  %v66 = vld [vmem:[%s1 + $0x50] sm:$0xf]
  %v67 = vld [vmem:[%s1 + $0x54] sm:$0xf]
  %v68 = vld [vmem:[%s1 + $0x58] sm:$0xf]
  %v69 = vld [vmem:[%s1 + $0x5c] sm:$0xf]
  %v72 = vunpack.c.l.b16 %v44
  %v73 = vunpack.c.h.b16 %v44
  %v74 = vunpack.c.l.b16 %v45
  %v75 = vunpack.c.h.b16 %v45
  %v76 = vpack.c.b16 %v74, %v72
  %v77 = vpack.c.b16 %v75, %v73
  %v103 = vunpack.c.l.b16 %v46
  %v104 = vunpack.c.l.b16 %v47
  %v105 = vunpack.c.l.b16 %v48
  %v106 = vunpack.c.l.b16 %v49
  %v107 = vunpack.c.l.b16 %v50
  %v108 = vunpack.c.l.b16 %v51
  %v109 = vunpack.c.l.b16 %v52
  %v110 = vunpack.c.l.b16 %v53
  %v111 = vunpack.c.l.b16 %v54
  %v112 = vunpack.c.l.b16 %v55
  %v113 = vunpack.c.l.b16 %v56
  %v114 = vunpack.c.l.b16 %v57
  %v115 = vunpack.c.l.b16 %v58
  %v116 = vunpack.c.l.b16 %v59
  %v117 = vunpack.c.l.b16 %v60
  %v118 = vunpack.c.l.b16 %v61
  %v119 = vunpack.c.l.b16 %v62
  %v120 = vunpack.c.l.b16 %v63
  %v121 = vunpack.c.l.b16 %v64
  %v122 = vunpack.c.l.b16 %v65
  %v123 = vunpack.c.l.b16 %v66
  %v124 = vunpack.c.l.b16 %v67
  %v125 = vunpack.c.l.b16 %v68
  %v126 = vunpack.c.l.b16 %v69
  %v127 = vpack.c.b16 %v104, %v103
  %v128 = vpack.c.b16 %v106, %v105
  %v129 = vpack.c.b16 %v108, %v107
  %v130 = vpack.c.b16 %v110, %v109
  %v131 = vpack.c.b16 %v112, %v111
  %v132 = vpack.c.b16 %v114, %v113
  %v133 = vpack.c.b16 %v116, %v115
  %v134 = vpack.c.b16 %v118, %v117
  %v135 = vpack.c.b16 %v120, %v119
  %v136 = vpack.c.b16 %v122, %v121
  %v137 = vpack.c.b16 %v124, %v123
  %v138 = vpack.c.b16 %v126, %v125
  %vm151 = vcmask 523264
  %v153 = vsel %vm151, %v77, 0
  %155 = vmatpush.bf16.msra.mxu0 %v134
  %156 = vmatpush.bf16.msra.mxu0 %v133
  %157 = vmatpush.bf16.msra.mxu0 %v132
  %158 = vmatpush.bf16.msra.mxu0 %v131
  %159 = vmatpush.bf16.msra.mxu0 %v130
  %160 = vmatpush.bf16.msra.mxu0 %v129
  %161 = vmatpush.bf16.msra.mxu0 %v128
  %162 = vmatpush.bf16.msra.mxu0 %v127
  %163 = vmatmul.bf16.gmra.mxu0 %v76
  %v164 = vpop.f32.mrf.mxu0
  %v165 = vadd.f32 %v27, %v164
  %v166 = vpop.f32.mrf.mxu0
  %v167 = vadd.f32 %v28, %v166
  %168 = vdwg.mxu0
  %169 = vmatpush.bf16.msra.mxu0 0
  %170 = vmatpush.bf16.msra.mxu0 0
  %171 = vmatpush.bf16.msra.mxu0 0
  %172 = vmatpush.bf16.msra.mxu0 0
  %173 = vmatpush.bf16.msra.mxu0 %v138
  %174 = vmatpush.bf16.msra.mxu0 %v137
  %175 = vmatpush.bf16.msra.mxu0 %v136
  %176 = vmatpush.bf16.msra.mxu0 %v135
  %177 = vmatmul.bf16.gmra.mxu0 %v153
  %v178 = vpop.f32.mrf.mxu0
  %v179 = vadd.f32 %v165, %v178
  %v180 = vpop.f32.mrf.mxu0
  %v181 = vadd.f32 %v167, %v180
  %182 = vdwg.mxu0
  %vm183 = vcmask 261120
  %v184 = vsel %vm183, %v179, 0.0
  %185 = vadd.xlane.f32.xlu0 %v184
  %v186 = vpop.xlane.xlu0 %185
  %v187 = vsel %vm183, %v181, 0.0
  %188 = vadd.xlane.f32.xlu0 %v187
  %v189 = vpop.xlane.xlu0 %188
  %v190 = vrcp.pop 32.0
  %v191 = vmul.f32 32.0, %v190
  %v192 = vsub.f32 1.0, %v191
  %v193 = vmul.f32 %v190, %v192
  %v194 = vadd.f32 %v190, %v193
  %vm195 = vweird.f32 %v190
  %v196 = vsel %vm195, %v190, %v194
  %v197 = vmul.f32 %v186, %v196
  %v198 = vmul.f32 %v189, %v196
  %v199 = vsub.f32 %v179, %v197
  %v200 = vsub.f32 %v181, %v198
  %v201 = vmul.f32 %v199, %v199
  %v202 = vmul.f32 %v200, %v200
  %v203 = vsel %vm183, %v201, 0.0
  %204 = vadd.xlane.f32.xlu0 %v203
  %v205 = vpop.xlane.xlu0 %204
  %v206 = vsel %vm183, %v202, 0.0
  %207 = vadd.xlane.f32.xlu0 %v206
  %v208 = vpop.xlane.xlu0 %207
  %v209 = vmul.f32 %v205, %v196
  %v210 = vmul.f32 %v208, %v196
  %v211 = vadd.f32 %v209, 1e-05
  %v212 = vadd.f32 %v210, 1e-05
  %v213 = vrsqrt.pop %v211
  %v214 = vmul.f32 %v213, %v211
  %v215 = vmul.f32 %v214, %v213
  %v216 = vmul.f32 0.5, %v215
  %v217 = vsub.f32 1.5, %v216
  %v218 = vmul.f32 %v213, %v217
  %vm219 = vweird.f32 %v211
  %vm220 = vweird.f32 %v213
  %vm221 = vmor %vm219, %vm220
  %v222 = vsel %vm221, %v213, %v218
  %v223 = vrsqrt.pop %v212
  %v224 = vmul.f32 %v223, %v212
  %v225 = vmul.f32 %v224, %v223
  %v226 = vmul.f32 0.5, %v225
  %v227 = vsub.f32 1.5, %v226
  %v228 = vmul.f32 %v223, %v227
  %vm229 = vweird.f32 %v212
  %vm230 = vweird.f32 %v223
  %vm231 = vmor %vm229, %vm230
  %v232 = vsel %vm231, %v223, %v228
  %v233 = vmul.f32 %v199, %v222
  %v234 = vmul.f32 %v200, %v232
  %v235 = vperm.slane %v32, 0
  %v236 = vmul.f32 %v233, %v235
  %v237 = vmul.f32 %v234, %v235
  %v238 = vperm.slane %v33, 0
  %v239 = vadd.f32 %v236, %v238
  %v240 = vadd.f32 %v237, %v238
  %v241 = vpack.c.bf16 %v240, %v239
  %v242 = vld [vmem:[%s2] sm:$0xff]
  %v243 = vld [vmem:[%s2 + $0x8] sm:$0xf]
  %v244 = vld [vmem:[%s2 + $0xc] sm:$0xff]
  %v245 = vld [vmem:[%s2 + $0x14] sm:$0xf]
  %v246 = vld [vmem:[%s2 + $0x18] sm:$0xff]
  %v247 = vld [vmem:[%s2 + $0x20] sm:$0xf]
  %v248 = vld [vmem:[%s2 + $0x24] sm:$0xff]
  %v249 = vld [vmem:[%s2 + $0x2c] sm:$0xf]
  %v258 = vunpack.c.l.b16 %v242
  %v259 = vunpack.c.h.b16 %v242
  %v260 = vunpack.c.l.b16 %v243
  %v261 = vunpack.c.l.b16 %v244
  %v262 = vunpack.c.h.b16 %v244
  %v263 = vunpack.c.l.b16 %v245
  %v264 = vunpack.c.l.b16 %v246
  %v265 = vunpack.c.h.b16 %v246
  %v266 = vunpack.c.l.b16 %v247
  %v267 = vunpack.c.l.b16 %v248
  %v268 = vunpack.c.h.b16 %v248
  %v269 = vunpack.c.l.b16 %v249
  %v270 = vpack.c.b16 %v261, %v258
  %v271 = vpack.c.b16 %v262, %v259
  %v272 = vpack.c.b16 %v263, %v260
  %v273 = vpack.c.b16 %v267, %v264
  %v274 = vpack.c.b16 %v268, %v265
  %v275 = vpack.c.b16 %v269, %v266
  %v283 = vsel %vm183, %v241, 0
  %285 = vmatpush.bf16.msra.mxu0 0
  %286 = vmatpush.bf16.msra.mxu0 0
  %287 = vmatpush.bf16.msra.mxu0 0
  %288 = vmatpush.bf16.msra.mxu0 0
  %289 = vmatpush.bf16.msra.mxu0 0
  %290 = vmatpush.bf16.msra.mxu0 0
  %291 = vmatpush.bf16.msra.mxu0 %v273
  %292 = vmatpush.bf16.msra.mxu0 %v270
  %293 = vmatmul.bf16.gmra.mxu0 %v283
  %v294 = vpop.f32.mrf.mxu0
  %v295 = vadd.f32 0.0, %v294
  %v296 = vpop.f32.mrf.mxu0
  %v297 = vadd.f32 0.0, %v296
  %298 = vdwg.mxu0
  %299 = vmatpush.bf16.msra.mxu0 0
  %300 = vmatpush.bf16.msra.mxu0 0
  %301 = vmatpush.bf16.msra.mxu0 0
  %302 = vmatpush.bf16.msra.mxu0 0
  %303 = vmatpush.bf16.msra.mxu0 0
  %304 = vmatpush.bf16.msra.mxu0 0
  %305 = vmatpush.bf16.msra.mxu0 %v274
  %306 = vmatpush.bf16.msra.mxu0 %v271
  %307 = vmatmul.bf16.gmra.mxu0 %v283
  %v308 = vpop.f32.mrf.mxu0
  %v309 = vadd.f32 0.0, %v308
  %v310 = vpop.f32.mrf.mxu0
  %v311 = vadd.f32 0.0, %v310
  %312 = vdwg.mxu0
  %313 = vmatpush.bf16.msra.mxu0 0
  %314 = vmatpush.bf16.msra.mxu0 0
  %315 = vmatpush.bf16.msra.mxu0 0
  %316 = vmatpush.bf16.msra.mxu0 0
  %317 = vmatpush.bf16.msra.mxu0 0
  %318 = vmatpush.bf16.msra.mxu0 0
  %319 = vmatpush.bf16.msra.mxu0 %v275
  %320 = vmatpush.bf16.msra.mxu0 %v272
  %321 = vmatmul.bf16.gmra.mxu0 %v283
  %v322 = vpop.f32.mrf.mxu0
  %v323 = vadd.f32 0.0, %v322
  %v324 = vpop.f32.mrf.mxu0
  %v325 = vadd.f32 0.0, %v324
  %326 = vdwg.mxu0
  %v327 = vperm.slane %v34, 0
  %v328 = vadd.f32 %v295, %v327
  %v329 = vadd.f32 %v297, %v327
  %v330 = vperm.slane %v35, 0
  %v331 = vadd.f32 %v309, %v330
  %v332 = vadd.f32 %v311, %v330
  %v333 = vperm.slane %v36, 0
  %v334 = vadd.f32 %v323, %v333
  %v335 = vadd.f32 %v325, %v333
  %v337 = vsel %vm183, %v328, 0
  %v340 = vsel %vm183, %v329, 0
  %v343 = vsel %vm183, %v331, 0
  %v346 = vsel %vm183, %v332, 0
  %348 = vmatpush.xpose.msra.mxu0 0.0
  %349 = vmatpush.xpose.msra.mxu0 0.0
  %350 = vmatpush.xpose.msra.mxu0 0.0
  %351 = vmatpush.xpose.msra.mxu0 0.0
  %352 = vmatpush.xpose.msra.mxu0 0.0
  %353 = vmatpush.xpose.msra.mxu0 0.0
  %354 = vmatpush.xpose.msra.mxu0 0.0
  %355 = vmatpush.xpose.msra.mxu0 0.0
  %356 = vmatpush.xpose.msra.mxu0 0.0
  %357 = vmatpush.xpose.msra.mxu0 0.0
  %358 = vmatpush.xpose.msra.mxu0 0.0
  %359 = vmatpush.xpose.msra.mxu0 0.0
  %360 = vmatpush.xpose.msra.mxu0 0.0
  %361 = vmatpush.xpose.msra.mxu0 0.0
  %362 = vmatpush.xpose.msra.mxu0 %v346
  %363 = vmatpush.xpose.msra.mxu0 %v343
  %364 = vmatmul.f32.gmra.mxu0 %v337
  %v365 = vpop.f32.mrf.mxu0
  %v366 = vadd.f32 0.0, %v365
  %367 = vmatmul.f32.gmra.mxu0 %v340
  %v368 = vpop.f32.mrf.mxu0
  %v369 = vadd.f32 0.0, %v368
  %370 = vdwg.mxu0
  %v371 = vmul.f32 %v366, 0.17677669
  %v372 = vmul.f32 %v369, 0.17677669
  %v373 = vadd.f32 %v371, %v29
  %v374 = vadd.f32 %v372, %v30
  %vm375 = vcmask 130048
  %v376 = vsel %vm375, %v373, -inf
  %377 = vmax.xlane.f32.xlu0 %v376
  %v378 = vpop.xlane.xlu0 %377
  %v379 = vsel %vm375, %v374, -inf
  %380 = vmax.xlane.f32.xlu0 %v379
  %v381 = vpop.xlane.xlu0 %380
  %v382 = vsub.f32 %v373, %v378
  %v383 = vsub.f32 %v374, %v381
  %v384 = vmul.f32 %v382, 1.442695
  %v385 = vpow.pop %v384
  %v386 = vmul.f32 %v383, 1.442695
  %v387 = vpow.pop %v386
  %v388 = vsel %vm375, %v385, 0.0
  %389 = vadd.xlane.f32.xlu0 %v388
  %v390 = vpop.xlane.xlu0 %389
  %v391 = vsel %vm375, %v387, 0.0
  %392 = vadd.xlane.f32.xlu0 %v391
  %v393 = vpop.xlane.xlu0 %392
  %v394 = vrcp.pop %v390
  %v395 = vrcp.pop %v393
  %v396 = vmul.f32 %v385, %v394
  %v397 = vmul.f32 %v387, %v395
  %v399 = vsel %vm375, %v396, 0
  %v402 = vsel %vm375, %v397, 0
  %404 = vmatpush.msra.mxu0 0.0
  %405 = vmatpush.msra.mxu0 0.0
  %406 = vmatpush.msra.mxu0 0.0
  %407 = vmatpush.msra.mxu0 0.0
  %408 = vmatpush.msra.mxu0 0.0
  %409 = vmatpush.msra.mxu0 0.0
  %410 = vmatpush.msra.mxu0 0.0
  %411 = vmatpush.msra.mxu0 0.0
  %412 = vmatpush.msra.mxu0 0.0
  %413 = vmatpush.msra.mxu0 0.0
  %414 = vmatpush.msra.mxu0 0.0
  %415 = vmatpush.msra.mxu0 0.0
  %416 = vmatpush.msra.mxu0 0.0
  %417 = vmatpush.msra.mxu0 0.0
  %418 = vmatpush.msra.mxu0 %v335
  %419 = vmatpush.msra.mxu0 %v334
  %420 = vmatmul.f32.gmra.mxu0 %v399
  %v421 = vpop.f32.mrf.mxu0
  %v422 = vadd.f32 0.0, %v421
  %423 = vmatmul.f32.gmra.mxu0 %v402
  %v424 = vpop.f32.mrf.mxu0
  %v425 = vadd.f32 0.0, %v424
  %426 = vdwg.mxu0
  %v427 = vpack.c.bf16 %v425, %v422
  %v428 = vld [vmem:[%s3] sm:$0xf]
  %v429 = vld [vmem:[%s3 + $0x4] sm:$0xf]
  %v430 = vld [vmem:[%s3 + $0x8] sm:$0xf]
  %v431 = vld [vmem:[%s3 + $0xc] sm:$0xf]
  %v436 = vunpack.c.l.b16 %v428
  %v437 = vunpack.c.l.b16 %v429
  %v438 = vunpack.c.l.b16 %v430
  %v439 = vunpack.c.l.b16 %v431
  %v440 = vpack.c.b16 %v437, %v436
  %v441 = vpack.c.b16 %v439, %v438
  %v445 = vsel %vm183, %v427, 0
  %447 = vmatpush.bf16.msra.mxu0 0
  %448 = vmatpush.bf16.msra.mxu0 0
  %449 = vmatpush.bf16.msra.mxu0 0
  %450 = vmatpush.bf16.msra.mxu0 0
  %451 = vmatpush.bf16.msra.mxu0 0
  %452 = vmatpush.bf16.msra.mxu0 0
  %453 = vmatpush.bf16.msra.mxu0 %v441
  %454 = vmatpush.bf16.msra.mxu0 %v440
  %455 = vmatmul.bf16.gmra.mxu0 %v445
  %v456 = vpop.f32.mrf.mxu0
  %v457 = vadd.f32 0.0, %v456
  %v458 = vpop.f32.mrf.mxu0
  %v459 = vadd.f32 0.0, %v458
  %460 = vdwg.mxu0
  %v461 = vadd.f32 %v179, %v457
  %v462 = vadd.f32 %v181, %v459
  %v463 = vperm.slane %v37, 0
  %v464 = vadd.f32 %v461, %v463
  %v465 = vadd.f32 %v462, %v463
  %v466 = vsel %vm183, %v464, 0.0
  %467 = vadd.xlane.f32.xlu0 %v466
  %v468 = vpop.xlane.xlu0 %467
  %v469 = vsel %vm183, %v465, 0.0
  %470 = vadd.xlane.f32.xlu0 %v469
  %v471 = vpop.xlane.xlu0 %470
  %v472 = vmul.f32 %v468, %v196
  %v473 = vmul.f32 %v471, %v196
  %v474 = vsub.f32 %v464, %v472
  %v475 = vsub.f32 %v465, %v473
  %v476 = vmul.f32 %v474, %v474
  %v477 = vmul.f32 %v475, %v475
  %v478 = vsel %vm183, %v476, 0.0
  %479 = vadd.xlane.f32.xlu0 %v478
  %v480 = vpop.xlane.xlu0 %479
  %v481 = vsel %vm183, %v477, 0.0
  %482 = vadd.xlane.f32.xlu0 %v481
  %v483 = vpop.xlane.xlu0 %482
  %v484 = vmul.f32 %v480, %v196
  %v485 = vmul.f32 %v483, %v196
  %v486 = vadd.f32 %v484, 1e-05
  %v487 = vadd.f32 %v485, 1e-05
  %v488 = vrsqrt.pop %v486
  %v489 = vmul.f32 %v488, %v486
  %v490 = vmul.f32 %v489, %v488
  %v491 = vmul.f32 0.5, %v490
  %v492 = vsub.f32 1.5, %v491
  %v493 = vmul.f32 %v488, %v492
  %vm494 = vweird.f32 %v486
  %vm495 = vweird.f32 %v488
  %vm496 = vmor %vm494, %vm495
  %v497 = vsel %vm496, %v488, %v493
  %v498 = vrsqrt.pop %v487
  %v499 = vmul.f32 %v498, %v487
  %v500 = vmul.f32 %v499, %v498
  %v501 = vmul.f32 0.5, %v500
  %v502 = vsub.f32 1.5, %v501
  %v503 = vmul.f32 %v498, %v502
  %vm504 = vweird.f32 %v487
  %vm505 = vweird.f32 %v498
  %vm506 = vmor %vm504, %vm505
  %v507 = vsel %vm506, %v498, %v503
  %v508 = vmul.f32 %v474, %v497
  %v509 = vmul.f32 %v475, %v507
  %v510 = vperm.slane %v38, 0
  %v511 = vmul.f32 %v508, %v510
  %v512 = vmul.f32 %v509, %v510
  %v513 = vperm.slane %v39, 0
  %v514 = vadd.f32 %v511, %v513
  %v515 = vadd.f32 %v512, %v513
  %v516 = vpack.c.bf16 %v515, %v514
  %v517 = vld [vmem:[%s3 + $0x10] sm:$0xf]
  %v518 = vld [vmem:[%s3 + $0x14] sm:$0xf]
  %v519 = vld [vmem:[%s3 + $0x18] sm:$0xf]
  %v520 = vld [vmem:[%s3 + $0x1c] sm:$0xf]
  %v521 = vperm.slane %v40, 0
  %v526 = vunpack.c.l.b16 %v517
  %v527 = vunpack.c.l.b16 %v518
  %v528 = vunpack.c.l.b16 %v519
  %v529 = vunpack.c.l.b16 %v520
  %v530 = vpack.c.b16 %v527, %v526
  %v531 = vpack.c.b16 %v529, %v528
  %v535 = vsel %vm183, %v516, 0
  %537 = vmatpush.bf16.msra.mxu0 0
  %538 = vmatpush.bf16.msra.mxu0 0
  %539 = vmatpush.bf16.msra.mxu0 0
  %540 = vmatpush.bf16.msra.mxu0 0
  %541 = vmatpush.bf16.msra.mxu0 0
  %542 = vmatpush.bf16.msra.mxu0 0
  %543 = vmatpush.bf16.msra.mxu0 %v531
  %544 = vmatpush.bf16.msra.mxu0 %v530
  %545 = vmatmul.bf16.gmra.mxu0 %v535
  %v546 = vpop.f32.mrf.mxu0
  %v547 = vadd.f32 %v521, %v546
  %v548 = vpop.f32.mrf.mxu0
  %v549 = vadd.f32 %v521, %v548
  %550 = vdwg.mxu0
  %v551 = vmul.f32 %v547, %v547
  %v552 = vmul.f32 %v549, %v549
  %v553 = vmul.f32 %v547, %v551
  %v554 = vmul.f32 %v549, %v552
  %v555 = vmul.f32 %v553, 0.044715
  %v556 = vmul.f32 %v554, 0.044715
  %v557 = vadd.f32 %v547, %v555
  %v558 = vadd.f32 %v549, %v556
  %v559 = vmul.f32 %v557, 0.7978846
  %v560 = vmul.f32 %v558, 0.7978846
  %v561 = vtanh.pop %v559
  %v562 = vtanh.pop %v560
  %v563 = vadd.f32 %v561, 1.0
  %v564 = vadd.f32 %v562, 1.0
  %v565 = vmul.f32 %v563, 0.5
  %v566 = vmul.f32 %v564, 0.5
  %v567 = vmul.f32 %v547, %v565
  %v568 = vmul.f32 %v549, %v566
  %v569 = vpack.c.bf16 %v568, %v567
  %v570 = vld [vmem:[%s3 + $0x20] sm:$0xf]
  %v571 = vld [vmem:[%s3 + $0x24] sm:$0xf]
  %v572 = vld [vmem:[%s3 + $0x28] sm:$0xf]
  %v573 = vld [vmem:[%s3 + $0x2c] sm:$0xf]
  %v574 = vld [vmem:[%s3 + $0x30] sm:$0xf]
  %v575 = vld [vmem:[%s3 + $0x34] sm:$0xf]
  %v576 = vld [vmem:[%s3 + $0x38] sm:$0xf]
  %v577 = vld [vmem:[%s3 + $0x3c] sm:$0xf]
  %v586 = vunpack.c.l.b16 %v570
  %v587 = vunpack.c.l.b16 %v571
  %v588 = vunpack.c.l.b16 %v572
  %v589 = vunpack.c.l.b16 %v573
  %v590 = vunpack.c.l.b16 %v574
  %v591 = vunpack.c.l.b16 %v575
  %v592 = vunpack.c.l.b16 %v576
  %v593 = vunpack.c.l.b16 %v577
  %v594 = vpack.c.b16 %v587, %v586
  %v595 = vpack.c.b16 %v589, %v588
  %v596 = vpack.c.b16 %v591, %v590
  %v597 = vpack.c.b16 %v593, %v592
  %v603 = vsel %vm151, %v569, 0
  %605 = vmatpush.bf16.msra.mxu0 0
  %606 = vmatpush.bf16.msra.mxu0 0
  %607 = vmatpush.bf16.msra.mxu0 0
  %608 = vmatpush.bf16.msra.mxu0 0
  %609 = vmatpush.bf16.msra.mxu0 %v597
  %610 = vmatpush.bf16.msra.mxu0 %v596
  %611 = vmatpush.bf16.msra.mxu0 %v595
  %612 = vmatpush.bf16.msra.mxu0 %v594
  %613 = vmatmul.bf16.gmra.mxu0 %v603
  %v614 = vpop.f32.mrf.mxu0
  %v615 = vadd.f32 0.0, %v614
  %v616 = vpop.f32.mrf.mxu0
  %v617 = vadd.f32 0.0, %v616
  %618 = vdwg.mxu0
  %v619 = vadd.f32 %v464, %v615
  %v620 = vadd.f32 %v465, %v617
  %v621 = vperm.slane %v41, 0
  %v622 = vadd.f32 %v619, %v621
  %v623 = vadd.f32 %v620, %v621
  %v624 = vsel %vm183, %v622, 0.0
  %625 = vadd.xlane.f32.xlu0 %v624
  %v626 = vpop.xlane.xlu0 %625
  %v627 = vsel %vm183, %v623, 0.0
  %628 = vadd.xlane.f32.xlu0 %v627
  %v629 = vpop.xlane.xlu0 %628
  %v630 = vmul.f32 %v626, %v196
  %v631 = vmul.f32 %v629, %v196
  %v632 = vsub.f32 %v622, %v630
  %v633 = vsub.f32 %v623, %v631
  %v634 = vmul.f32 %v632, %v632
  %v635 = vmul.f32 %v633, %v633
  %v636 = vsel %vm183, %v634, 0.0
  %637 = vadd.xlane.f32.xlu0 %v636
  %v638 = vpop.xlane.xlu0 %637
  %v639 = vsel %vm183, %v635, 0.0
  %640 = vadd.xlane.f32.xlu0 %v639
  %v641 = vpop.xlane.xlu0 %640
  %v642 = vmul.f32 %v638, %v196
  %v643 = vmul.f32 %v641, %v196
  %v644 = vadd.f32 %v642, 1e-05
  %v645 = vadd.f32 %v643, 1e-05
  %v646 = vrsqrt.pop %v644
  %v647 = vmul.f32 %v646, %v644
  %v648 = vmul.f32 %v647, %v646
  %v649 = vmul.f32 0.5, %v648
  %v650 = vsub.f32 1.5, %v649
  %v651 = vmul.f32 %v646, %v650
  %vm652 = vweird.f32 %v644
  %vm653 = vweird.f32 %v646
  %vm654 = vmor %vm652, %vm653
  %v655 = vsel %vm654, %v646, %v651
  %v656 = vrsqrt.pop %v645
  %v657 = vmul.f32 %v656, %v645
  %v658 = vmul.f32 %v657, %v656
  %v659 = vmul.f32 0.5, %v658
  %v660 = vsub.f32 1.5, %v659
  %v661 = vmul.f32 %v656, %v660
  %vm662 = vweird.f32 %v645
  %vm663 = vweird.f32 %v656
  %vm664 = vmor %vm662, %vm663
  %v665 = vsel %vm664, %v656, %v661
  %v666 = vmul.f32 %v632, %v655
  %v667 = vmul.f32 %v633, %v665
  %v668 = vperm.slane %v42, 0
  %v669 = vmul.f32 %v666, %v668
  %v670 = vmul.f32 %v667, %v668
  %v671 = vperm.slane %v43, 0
  %v672 = vadd.f32 %v669, %v671
  %v673 = vadd.f32 %v670, %v671
  %v675 = vsel %vm375, %v31, 0
  %677 = vmatpush.msra.mxu0 0.0
  %678 = vmatpush.msra.mxu0 0.0
  %679 = vmatpush.msra.mxu0 0.0
  %680 = vmatpush.msra.mxu0 0.0
  %681 = vmatpush.msra.mxu0 0.0
  %682 = vmatpush.msra.mxu0 0.0
  %683 = vmatpush.msra.mxu0 0.0
  %684 = vmatpush.msra.mxu0 0.0
  %685 = vmatpush.msra.mxu0 0.0
  %686 = vmatpush.msra.mxu0 0.0
  %687 = vmatpush.msra.mxu0 0.0
  %688 = vmatpush.msra.mxu0 0.0
  %689 = vmatpush.msra.mxu0 0.0
  %690 = vmatpush.msra.mxu0 0.0
  %691 = vmatpush.msra.mxu0 %v673
  %692 = vmatpush.msra.mxu0 %v672
  %693 = vmatmul.f32.gmra.mxu0 %v675
  %v694 = vpop.f32.mrf.mxu0
  %v695 = vadd.f32 0.0, %v694
  %696 = vdwg.mxu0
  %v697 = vpack.c.bf16 %v695, %v695
  %v698 = vld [vmem:[%s4] sm:$0xff]
  %v699 = vld [vmem:[%s4 + $0x8] sm:$0xff]
  %v700 = vld [vmem:[%s4 + $0x10] sm:$0xff]
  %v701 = vld [vmem:[%s4 + $0x18] sm:$0xff]
  %v702 = vld [vmem:[%s4 + $0x20] sm:$0xff]
  %v703 = vld [vmem:[%s4 + $0x28] sm:$0xff]
  %v704 = vld [vmem:[%s4 + $0x30] sm:$0xff]
  %v705 = vld [vmem:[%s4 + $0x38] sm:$0xff]
  %v706 = vld [vmem:[%s4 + $0x40] sm:$0xff]
  %v707 = vld [vmem:[%s4 + $0x48] sm:$0xff]
  %v708 = vld [vmem:[%s4 + $0x50] sm:$0xff]
  %v709 = vld [vmem:[%s4 + $0x58] sm:$0xff]
  %v710 = vld [vmem:[%s5] sm:$0x3f]
  %v712 = vperm.slane %v710, 0
  %v713 = vperm.slane %v710, 1
  %v714 = vperm.slane %v710, 2
  %v715 = vperm.slane %v710, 3
  %v716 = vperm.slane %v710, 4
  %v717 = vperm.slane %v710, 5
  %v736 = vunpack.c.l.b16 %v698
  %v737 = vunpack.c.h.b16 %v698
  %v738 = vunpack.c.l.b16 %v699
  %v739 = vunpack.c.h.b16 %v699
  %v740 = vunpack.c.l.b16 %v700
  %v741 = vunpack.c.h.b16 %v700
  %v742 = vunpack.c.l.b16 %v701
  %v743 = vunpack.c.h.b16 %v701
  %v744 = vunpack.c.l.b16 %v702
  %v745 = vunpack.c.h.b16 %v702
  %v746 = vunpack.c.l.b16 %v703
  %v747 = vunpack.c.h.b16 %v703
  %v748 = vunpack.c.l.b16 %v704
  %v749 = vunpack.c.h.b16 %v704
  %v750 = vunpack.c.l.b16 %v705
  %v751 = vunpack.c.h.b16 %v705
  %v752 = vunpack.c.l.b16 %v706
  %v753 = vunpack.c.h.b16 %v706
  %v754 = vunpack.c.l.b16 %v707
  %v755 = vunpack.c.h.b16 %v707
  %v756 = vunpack.c.l.b16 %v708
  %v757 = vunpack.c.h.b16 %v708
  %v758 = vunpack.c.l.b16 %v709
  %v759 = vunpack.c.h.b16 %v709
  %v760 = vpack.c.b16 %v742, %v736
  %v761 = vpack.c.b16 %v743, %v737
  %v762 = vpack.c.b16 %v744, %v738
  %v763 = vpack.c.b16 %v745, %v739
  %v764 = vpack.c.b16 %v746, %v740
  %v765 = vpack.c.b16 %v747, %v741
  %v766 = vpack.c.b16 %v754, %v748
  %v767 = vpack.c.b16 %v755, %v749
  %v768 = vpack.c.b16 %v756, %v750
  %v769 = vpack.c.b16 %v757, %v751
  %v770 = vpack.c.b16 %v758, %v752
  %v771 = vpack.c.b16 %v759, %v753
  %v785 = vsel %vm183, %v697, 0
  %787 = vmatpush.bf16.msra.mxu0 0
  %788 = vmatpush.bf16.msra.mxu0 0
  %789 = vmatpush.bf16.msra.mxu0 0
  %790 = vmatpush.bf16.msra.mxu0 0
  %791 = vmatpush.bf16.msra.mxu0 0
  %792 = vmatpush.bf16.msra.mxu0 0
  %793 = vmatpush.bf16.msra.mxu0 %v766
  %794 = vmatpush.bf16.msra.mxu0 %v760
  %795 = vmatmul.bf16.gmra.mxu0 %v785
  %v796 = vpop.f32.mrf.mxu0
  %v797 = vadd.f32 %v712, %v796
  %v798 = vpop.f32.mrf.mxu0
  %799 = vdwg.mxu0
  %800 = vmatpush.bf16.msra.mxu0 0
  %801 = vmatpush.bf16.msra.mxu0 0
  %802 = vmatpush.bf16.msra.mxu0 0
  %803 = vmatpush.bf16.msra.mxu0 0
  %804 = vmatpush.bf16.msra.mxu0 0
  %805 = vmatpush.bf16.msra.mxu0 0
  %806 = vmatpush.bf16.msra.mxu0 %v767
  %807 = vmatpush.bf16.msra.mxu0 %v761
  %808 = vmatmul.bf16.gmra.mxu0 %v785
  %v809 = vpop.f32.mrf.mxu0
  %v810 = vadd.f32 %v713, %v809
  %v811 = vpop.f32.mrf.mxu0
  %812 = vdwg.mxu0
  %813 = vmatpush.bf16.msra.mxu0 0
  %814 = vmatpush.bf16.msra.mxu0 0
  %815 = vmatpush.bf16.msra.mxu0 0
  %816 = vmatpush.bf16.msra.mxu0 0
  %817 = vmatpush.bf16.msra.mxu0 0
  %818 = vmatpush.bf16.msra.mxu0 0
  %819 = vmatpush.bf16.msra.mxu0 %v768
  %820 = vmatpush.bf16.msra.mxu0 %v762
  %821 = vmatmul.bf16.gmra.mxu0 %v785
  %v822 = vpop.f32.mrf.mxu0
  %v823 = vadd.f32 %v714, %v822
  %v824 = vpop.f32.mrf.mxu0
  %825 = vdwg.mxu0
  %826 = vmatpush.bf16.msra.mxu0 0
  %827 = vmatpush.bf16.msra.mxu0 0
  %828 = vmatpush.bf16.msra.mxu0 0
  %829 = vmatpush.bf16.msra.mxu0 0
  %830 = vmatpush.bf16.msra.mxu0 0
  %831 = vmatpush.bf16.msra.mxu0 0
  %832 = vmatpush.bf16.msra.mxu0 %v769
  %833 = vmatpush.bf16.msra.mxu0 %v763
  %834 = vmatmul.bf16.gmra.mxu0 %v785
  %v835 = vpop.f32.mrf.mxu0
  %v836 = vadd.f32 %v715, %v835
  %v837 = vpop.f32.mrf.mxu0
  %838 = vdwg.mxu0
  %839 = vmatpush.bf16.msra.mxu0 0
  %840 = vmatpush.bf16.msra.mxu0 0
  %841 = vmatpush.bf16.msra.mxu0 0
  %842 = vmatpush.bf16.msra.mxu0 0
  %843 = vmatpush.bf16.msra.mxu0 0
  %844 = vmatpush.bf16.msra.mxu0 0
  %845 = vmatpush.bf16.msra.mxu0 %v770
  %846 = vmatpush.bf16.msra.mxu0 %v764
  %847 = vmatmul.bf16.gmra.mxu0 %v785
  %v848 = vpop.f32.mrf.mxu0
  %v849 = vadd.f32 %v716, %v848
  %v850 = vpop.f32.mrf.mxu0
  %851 = vdwg.mxu0
  %852 = vmatpush.bf16.msra.mxu0 0
  %853 = vmatpush.bf16.msra.mxu0 0
  %854 = vmatpush.bf16.msra.mxu0 0
  %855 = vmatpush.bf16.msra.mxu0 0
  %856 = vmatpush.bf16.msra.mxu0 0
  %857 = vmatpush.bf16.msra.mxu0 0
  %858 = vmatpush.bf16.msra.mxu0 %v771
  %859 = vmatpush.bf16.msra.mxu0 %v765
  %860 = vmatmul.bf16.gmra.mxu0 %v785
  %v861 = vpop.f32.mrf.mxu0
  %v862 = vadd.f32 %v717, %v861
  %v863 = vpop.f32.mrf.mxu0
  %864 = vdwg.mxu0
  %v871 = vrot.slane %v810, 4
  %v872 = vrot.slane %v836, 4
  %v873 = vrot.slane %v862, 4
  %vm874 = vcmask 1043456
  %v875 = vsel %vm874, %v797, %v871
  %v876 = vsel %vm874, %v823, %v872
  %v877 = vsel %vm874, %v849, %v873
  %881 = vst [vmem:[%s7] sm:$0xff] %v875
  %882 = vst [vmem:[%s7 + $0x8] sm:$0xff] %v876
  %883 = vst [vmem:[%s7 + $0x10] sm:$0xff] %v877
  // Predicated region
  $region30: #{video_gan_forward.1} parent=0 // pred_check
    _
  $region31: #{video_gan_forward.1} parent=0 // pred_check_branch
    %885 = sbr.rel (0) target = $region33
  $region32: #{video_gan_forward.1} parent=0 // pred_region
    _
  $region33: #{video_gan_forward.1} parent=0 // pred_fallthru
    _
  // Predicated region
  $region34: #{video_gan_forward.1} parent=0 // pred_check
    _
  $region35: #{video_gan_forward.1} parent=0 // pred_check_branch
    %887 = sbr.rel (0) target = $region37
  $region36: #{video_gan_forward.1} parent=0 // pred_region
    _
  $region37: #{video_gan_forward.1} parent=0 // pred_fallthru
    _

</llo_original>
